<compile_context>
chip_gen: v7x
topology: tpu7x:2x2x1
jax: 0.10.0
libtpu: 0.0.40
codegen_flags: <defaults>
</compile_context>

<pallas_src>
import functools

import jax
import jax.numpy as jnp
from jax import lax
from jax.experimental import pallas as pl
from jax.experimental.pallas import tpu as pltpu


def _round_up(n, m):
    return ((n + m - 1) // m) * m


def _ceb_pool_kernel(x_ref, w_ref, b_ref, o_ref, *, k, use_packed_key):
    """Top-k (values, descending, per column) + linear for Bt sequences.

    x_ref: (Bt, S, E)    input embeddings (Bt sequences per grid step)
    w_ref: (E, Ep)       pre-transposed linear weight (in, out), out-dim padded
    b_ref: (1, Ep)       bias, padded
    o_ref: (K*Bt, Ep)    output rows, k-major within the block (row = rank*Bt + b)
    """
    s = x_ref.shape[1]
    x = x_ref[...]                                            # (Bt, S, E)
    rows = []                                                 # K x (Bt, E)

    if use_packed_key:
        # bf16 fast path: pack each element into one monotone int32 key
        #   [ order-preserving bf16 value bits : 16 | inverted row index : 16 ]
        # -> each extraction is one max-reduce + one compare + one select.
        xf = x.astype(jnp.float32)                            # exact bf16 widening
        bits = pltpu.bitcast(xf, jnp.int32)
        key = jnp.where(bits < 0, bits ^ jnp.int32(0x7FFFFFFF), bits)
        key = jnp.where(jnp.isnan(xf), jnp.int32(0x7FFF0000), key)   # NaN = largest
        row_idx = lax.broadcasted_iota(jnp.int32, x.shape, 1)
        inv_idx = jnp.int32(0xFFFF) - row_idx                 # earlier row wins ties
        key = (key & jnp.int32(-65536)) | inv_idx
        int_min = jnp.iinfo(jnp.int32).min
        for i in range(k):
            mk = jnp.max(key, axis=1, keepdims=True)          # (Bt, 1, E)
            hi = mk & jnp.int32(-65536)
            vbits = jnp.where(hi < 0, hi ^ jnp.int32(0x7FFF0000), hi)
            rows.append(pltpu.bitcast(vbits, jnp.float32)[:, 0, :])   # exact bf16 value
            if i + 1 < k:
                key = jnp.where(key == mk, int_min, key)      # mask the unique max
    else:
        # Generic exact path (f32 / int): mask only the FIRST occurrence of the
        # column max each round so duplicate values are kept (torch.topk values).
        row_idx = lax.broadcasted_iota(jnp.int32, x.shape, 1)
        is_float = jnp.issubdtype(x.dtype, jnp.floating)
        if is_float:
            fill = jnp.array(-jnp.inf, dtype=x.dtype)
        else:
            fill = jnp.array(jnp.iinfo(x.dtype).min, dtype=x.dtype)
        vals = x
        for i in range(k):
            mx = jnp.max(vals, axis=1, keepdims=True)         # (Bt, 1, E)
            rows.append(mx[:, 0, :])
            if i + 1 < k:
                hit = vals == mx
                if is_float:
                    # torch.topk treats NaN as largest but still removes one per pick.
                    hit = hit | (jnp.isnan(vals) & jnp.isnan(mx))
                sel = jnp.min(jnp.where(hit, row_idx, s), axis=1, keepdims=True)
                vals = jnp.where(row_idx == sel, fill, vals)

    # Fuse all Bt*K pooled rows into one MXU matmul (k-major row order).
    pooled = jnp.concatenate(rows, axis=0)                    # (K*Bt, E)
    out = lax.dot_general(
        pooled.astype(w_ref.dtype), w_ref[...],
        dimension_numbers=(((1,), (0,)), ((), ())),
        preferred_element_type=jnp.float32,
    )                                                         # (K*Bt, Ep)
    out = out + b_ref[...].astype(jnp.float32)
    o_ref[...] = out.astype(o_ref.dtype)                      # dense 2-D store


def _pick_block_batch(batch, seq, embed, k, itemsize):
    """Largest divisor of `batch` whose x block fits a per-buffer VMEM budget and
    whose (k*Bt) output rows are sublane-legal (multiple of 8, or the full array)."""
    budget = 24 * 1024 * 1024                                 # v7x-safe per-buffer budget
    cap = max(1, budget // max(1, seq * embed * itemsize))
    legal = [d for d in range(1, batch + 1)
             if batch % d == 0 and ((k * d) % 8 == 0 or d == batch)]
    under = [d for d in legal if d <= cap]
    return max(under) if under else min(legal)


@functools.partial(jax.jit, static_argnames=("pool_size",))
def contextual_embedding_pooling(x, weight, bias, *, pool_size):
    """x: (S, E) or (B, S, E); weight: (E, E) torch nn.Linear layout (out, in); bias: (E,)."""
    squeeze_batch = x.ndim == 2
    if squeeze_batch:
        x = x[None]
    B, S, E = x.shape
    K = min(pool_size, S)
    Ep = _round_up(E, 128)                                    # lane-dense output / matmul N

    compute_dtype = jnp.promote_types(jnp.promote_types(x.dtype, weight.dtype), bias.dtype)

    # Pre-transpose the weight once and pad only its OUT dim / bias / output.
    # x itself is left unpadded (full-dim blocks are legal, no extra HBM pass).
    w_t = weight.astype(compute_dtype).T                      # (E_in, E_out)
    b_c = bias.astype(compute_dtype)
    if Ep != E:
        w_t = jnp.pad(w_t, ((0, 0), (0, Ep - E)))
        b_c = jnp.pad(b_c, (0, Ep - E))
    b_c = b_c.reshape(1, Ep)

    itemsize = jnp.dtype(x.dtype).itemsize
    Bt = _pick_block_batch(B, S, E, K, itemsize)
    n_blocks = B // Bt

    # Packed value+index key is exact only for bf16 (value held in 16 bits).
    use_packed_key = (x.dtype == jnp.bfloat16) and (S <= 65536) and (K >= 2)

    # Explicit VMEM limit from the chosen blocks (double buffering + temporaries).
    csz = jnp.dtype(compute_dtype).itemsize
    x_blk = Bt * S * E * itemsize
    need = 2 * (x_blk + E * Ep * csz + Ep * csz + K * Bt * Ep * csz) + 4 * x_blk
    vmem_limit = int(min(100 * 1024 * 1024, max(32 * 1024 * 1024, int(need * 1.5))))

    kernel = functools.partial(_ceb_pool_kernel, k=K, use_packed_key=use_packed_key)
    out = pl.pallas_call(
        kernel,
        out_shape=jax.ShapeDtypeStruct((n_blocks * K * Bt, Ep), compute_dtype),
        grid=(n_blocks,),
        in_specs=[
            pl.BlockSpec((Bt, S, E), lambda b: (b, 0, 0)),
            pl.BlockSpec((E, Ep), lambda b: (0, 0)),
            pl.BlockSpec((1, Ep), lambda b: (0, 0)),
        ],
        out_specs=pl.BlockSpec((K * Bt, Ep), lambda b: (b, 0)),
        compiler_params=pltpu.CompilerParams(
            dimension_semantics=("parallel",),
            vmem_limit_bytes=vmem_limit,
        ),
    )(x, w_t, b_c)

    # Rows inside each block are k-major: reorder (block, k, bt) -> (batch, k)
    # on the tiny output; fuses with the un-pad slice under jit.
    out = out.reshape(n_blocks, K, Bt, Ep).transpose(0, 2, 1, 3).reshape(B, K, Ep)
    out = out[:, :, :E]
    if squeeze_batch:
        out = out[0]
    return out


def _reference(x, weight, bias, pool_size):
    K = min(pool_size, x.shape[0])
    pooled = jnp.sort(x, axis=0)[::-1][:K]                    # per-column top-k, desc
    return pooled @ weight.T + bias


if __name__ == "__main__":
    # Small shapes consistent with the module: batch=2, seq=8, embed_dim=32, pool_size=4.
    B, S, E, POOL = 2, 8, 32, 4

    key = jax.random.PRNGKey(0)
    kx, kw, kb = jax.random.split(key, 3)
    x = jax.random.normal(kx, (B, S, E), dtype=jnp.float32)
    weight = jax.random.normal(kw, (E, E), dtype=jnp.float32) * 0.1   # nn.Linear (out, in)
    bias = jax.random.normal(kb, (E,), dtype=jnp.float32) * 0.1

    # Batched call (Bt sequences per grid step, fused matmul).
    out = jax.block_until_ready(contextual_embedding_pooling(x, weight, bias, pool_size=POOL))
    ref = jax.vmap(lambda xi: _reference(xi, weight, bias, POOL))(x)
    assert out.shape == (B, min(POOL, S), E)
    assert jnp.allclose(out, ref, atol=1e-4, rtol=1e-4), "batched f32 mismatch vs reference"

    # Single-sequence call (exact module signature).
    out1 = jax.block_until_ready(contextual_embedding_pooling(x[0], weight, bias, pool_size=POOL))
    ref1 = _reference(x[0], weight, bias, POOL)
    assert out1.shape == (min(POOL, S), E)
    assert jnp.allclose(out1, ref1, atol=1e-4, rtol=1e-4), "single-seq f32 mismatch vs reference"

    # bf16 exercises the packed value+index top-k fast path.
    xb, wb, bb = x.astype(jnp.bfloat16), weight.astype(jnp.bfloat16), bias.astype(jnp.bfloat16)
    outb = jax.block_until_ready(contextual_embedding_pooling(xb, wb, bb, pool_size=POOL))
    refb = jax.vmap(lambda xi: _reference(xi.astype(jnp.float32),
                                          wb.astype(jnp.float32),
                                          bb.astype(jnp.float32), POOL))(xb)
    assert outb.shape == (B, min(POOL, S), E)
    assert jnp.allclose(outb.astype(jnp.float32), refb, atol=5e-2, rtol=5e-2), "bf16 mismatch"

    print("KERNEL_OK")
</pallas_src>

<mosaic_0001>
module attributes {stable_mosaic.version = 11 : i64} {
  func.func @_ceb_pool_kernel(%arg0: i32, %arg1: memref<2x8x32xf32, #tpu.memory_space<vmem>>, %arg2: memref<32x128xf32, #tpu.memory_space<vmem>>, %arg3: memref<1x128xf32, #tpu.memory_space<vmem>>, %arg4: memref<8x128xf32, #tpu.memory_space<vmem>>) attributes {dimension_semantics = [#tpu.dimension_semantics<parallel>], iteration_bounds = array<i64: 1>, scalar_prefetch = 0 : i64, scratch_operands = 0 : i64, tpu.core_type = #tpu.core_type<tc>, window_params = [{transform_indices = @transform_0, window_bounds = array<i64: 2, 8, 32>}, {pipeline_mode = #tpu.pipeline_mode<synchronous>, transform_indices = @transform_1, window_bounds = array<i64: 32, 128>}, {pipeline_mode = #tpu.pipeline_mode<synchronous>, transform_indices = @transform_2, window_bounds = array<i64: 1, 128>}, {transform_indices = @transform_3, window_bounds = array<i64: 8, 128>}]} {
    %c0 = arith.constant 0 : index
    %c0_0 = arith.constant 0 : index
    %c0_1 = arith.constant 0 : index
    %0 = vector.load %arg1[%c0, %c0_0, %c0_1] : memref<2x8x32xf32, #tpu.memory_space<vmem>>, vector<2x8x32xf32>
    %1 = tpu.iota {dimensions = array<i32: 1>} : vector<2x8x32xi32>
    %cst = arith.constant dense<0xFF800000> : vector<2x32xf32>
    %2 = vector.multi_reduction <maximumf>, %0, %cst [1] : vector<2x8x32xf32> to vector<2x32xf32>
    %3 = vector.shape_cast %2 : vector<2x32xf32> to vector<2x1x32xf32>
    %4 = vector.shape_cast %3 : vector<2x1x32xf32> to vector<2x32xf32>
    %5 = vector.broadcast %3 : vector<2x1x32xf32> to vector<2x8x32xf32>
    %6 = arith.cmpf oeq, %0, %5 : vector<2x8x32xf32>
    %7 = arith.cmpf one, %0, %0 : vector<2x8x32xf32>
    %8 = arith.cmpf one, %3, %3 : vector<2x1x32xf32>
    %9 = vector.broadcast %8 : vector<2x1x32xi1> to vector<2x8x32xi1>
    %10 = arith.andi %7, %9 : vector<2x8x32xi1>
    %11 = arith.ori %6, %10 : vector<2x8x32xi1>
    %c8_i32 = arith.constant 8 : i32
    %12 = vector.broadcast %c8_i32 : i32 to vector<2x8x32xi32>
    %13 = arith.select %11, %1, %12 : vector<2x8x32xi1>, vector<2x8x32xi32>
    %cst_2 = arith.constant dense<2147483647> : vector<2x32xi32>
    %14 = vector.multi_reduction <minsi>, %13, %cst_2 [1] : vector<2x8x32xi32> to vector<2x32xi32>
    %15 = vector.shape_cast %14 : vector<2x32xi32> to vector<2x1x32xi32>
    %16 = vector.broadcast %15 : vector<2x1x32xi32> to vector<2x8x32xi32>
    %17 = arith.cmpi eq, %1, %16 : vector<2x8x32xi32>
    %cst_3 = arith.constant 0xFF800000 : f32
    %18 = vector.broadcast %cst_3 : f32 to vector<2x8x32xf32>
    %19 = arith.select %17, %18, %0 : vector<2x8x32xi1>, vector<2x8x32xf32>
    %cst_4 = arith.constant dense<0xFF800000> : vector<2x32xf32>
    %20 = vector.multi_reduction <maximumf>, %19, %cst_4 [1] : vector<2x8x32xf32> to vector<2x32xf32>
    %21 = vector.shape_cast %20 : vector<2x32xf32> to vector<2x1x32xf32>
    %22 = vector.shape_cast %21 : vector<2x1x32xf32> to vector<2x32xf32>
    %23 = vector.broadcast %21 : vector<2x1x32xf32> to vector<2x8x32xf32>
    %24 = arith.cmpf oeq, %19, %23 : vector<2x8x32xf32>
    %25 = arith.cmpf one, %19, %19 : vector<2x8x32xf32>
    %26 = arith.cmpf one, %21, %21 : vector<2x1x32xf32>
    %27 = vector.broadcast %26 : vector<2x1x32xi1> to vector<2x8x32xi1>
    %28 = arith.andi %25, %27 : vector<2x8x32xi1>
    %29 = arith.ori %24, %28 : vector<2x8x32xi1>
    %c8_i32_5 = arith.constant 8 : i32
    %30 = vector.broadcast %c8_i32_5 : i32 to vector<2x8x32xi32>
    %31 = arith.select %29, %1, %30 : vector<2x8x32xi1>, vector<2x8x32xi32>
    %cst_6 = arith.constant dense<2147483647> : vector<2x32xi32>
    %32 = vector.multi_reduction <minsi>, %31, %cst_6 [1] : vector<2x8x32xi32> to vector<2x32xi32>
    %33 = vector.shape_cast %32 : vector<2x32xi32> to vector<2x1x32xi32>
    %34 = vector.broadcast %33 : vector<2x1x32xi32> to vector<2x8x32xi32>
    %35 = arith.cmpi eq, %1, %34 : vector<2x8x32xi32>
    %cst_7 = arith.constant 0xFF800000 : f32
    %36 = vector.broadcast %cst_7 : f32 to vector<2x8x32xf32>
    %37 = arith.select %35, %36, %19 : vector<2x8x32xi1>, vector<2x8x32xf32>
    %cst_8 = arith.constant dense<0xFF800000> : vector<2x32xf32>
    %38 = vector.multi_reduction <maximumf>, %37, %cst_8 [1] : vector<2x8x32xf32> to vector<2x32xf32>
    %39 = vector.shape_cast %38 : vector<2x32xf32> to vector<2x1x32xf32>
    %40 = vector.shape_cast %39 : vector<2x1x32xf32> to vector<2x32xf32>
    %41 = vector.broadcast %39 : vector<2x1x32xf32> to vector<2x8x32xf32>
    %42 = arith.cmpf oeq, %37, %41 : vector<2x8x32xf32>
    %43 = arith.cmpf one, %37, %37 : vector<2x8x32xf32>
    %44 = arith.cmpf one, %39, %39 : vector<2x1x32xf32>
    %45 = vector.broadcast %44 : vector<2x1x32xi1> to vector<2x8x32xi1>
    %46 = arith.andi %43, %45 : vector<2x8x32xi1>
    %47 = arith.ori %42, %46 : vector<2x8x32xi1>
    %c8_i32_9 = arith.constant 8 : i32
    %48 = vector.broadcast %c8_i32_9 : i32 to vector<2x8x32xi32>
    %49 = arith.select %47, %1, %48 : vector<2x8x32xi1>, vector<2x8x32xi32>
    %cst_10 = arith.constant dense<2147483647> : vector<2x32xi32>
    %50 = vector.multi_reduction <minsi>, %49, %cst_10 [1] : vector<2x8x32xi32> to vector<2x32xi32>
    %51 = vector.shape_cast %50 : vector<2x32xi32> to vector<2x1x32xi32>
    %52 = vector.broadcast %51 : vector<2x1x32xi32> to vector<2x8x32xi32>
    %53 = arith.cmpi eq, %1, %52 : vector<2x8x32xi32>
    %cst_11 = arith.constant 0xFF800000 : f32
    %54 = vector.broadcast %cst_11 : f32 to vector<2x8x32xf32>
    %55 = arith.select %53, %54, %37 : vector<2x8x32xi1>, vector<2x8x32xf32>
    %cst_12 = arith.constant dense<0xFF800000> : vector<2x32xf32>
    %56 = vector.multi_reduction <maximumf>, %55, %cst_12 [1] : vector<2x8x32xf32> to vector<2x32xf32>
    %57 = vector.shape_cast %56 : vector<2x32xf32> to vector<2x1x32xf32>
    %58 = vector.shape_cast %57 : vector<2x1x32xf32> to vector<2x32xf32>
    %59 = tpu.concatenate %4, %22, %40, %58 in 0 : vector<2x32xf32>, vector<2x32xf32>, vector<2x32xf32>, vector<2x32xf32> -> vector<8x32xf32>
    %c0_13 = arith.constant 0 : index
    %c0_14 = arith.constant 0 : index
    %60 = vector.load %arg2[%c0_13, %c0_14] : memref<32x128xf32, #tpu.memory_space<vmem>>, vector<32x128xf32>
    %cst_15 = arith.constant dense<0.000000e+00> : vector<8x128xf32>
    %61 = tpu.matmul %59, %60, %cst_15 {dimension_numbers = #tpu.dot_dimension_numbers<[1], [0], [0], [1], [0, 0, 1, 1], [], []>} : vector<8x32xf32>, vector<32x128xf32>, vector<8x128xf32> -> vector<8x128xf32>
    %c0_16 = arith.constant 0 : index
    %c0_17 = arith.constant 0 : index
    %62 = vector.load %arg3[%c0_16, %c0_17] : memref<1x128xf32, #tpu.memory_space<vmem>>, vector<1x128xf32>
    %63 = vector.broadcast %62 : vector<1x128xf32> to vector<8x128xf32>
    %64 = arith.addf %61, %63 : vector<8x128xf32>
    %c0_18 = arith.constant 0 : index
    %c0_19 = arith.constant 0 : index
    %65 = vector.load %arg4[%c0_18, %c0_19] : memref<8x128xf32, #tpu.memory_space<vmem>>, vector<8x128xf32>
    tpu.vector_store %arg4[%c0_18, %c0_19], %64 {strides = array<i32>} : memref<8x128xf32, #tpu.memory_space<vmem>>, vector<8x128xf32>,
    return
  }
  func.func @transform_0(%arg0: i32) -> (i32, i32, i32) {
    %c0_i32 = arith.constant 0 : i32
    %c0_i32_0 = arith.constant 0 : i32
    %c0_i32_1 = arith.constant 0 : i32
    return %arg0, %c0_i32, %c0_i32_0 : i32, i32, i32
  }
  func.func @transform_1(%arg0: i32) -> (i32, i32) {
    %c0_i32 = arith.constant 0 : i32
    %c0_i32_0 = arith.constant 0 : i32
    %c0_i32_1 = arith.constant 0 : i32
    return %c0_i32, %c0_i32_0 : i32, i32
  }
  func.func @transform_2(%arg0: i32) -> (i32, i32) {
    %c0_i32 = arith.constant 0 : i32
    %c0_i32_0 = arith.constant 0 : i32
    %c0_i32_1 = arith.constant 0 : i32
    return %c0_i32, %c0_i32_0 : i32, i32
  }
  func.func @transform_3(%arg0: i32) -> (i32, i32) {
    %c0_i32 = arith.constant 0 : i32
    %c0_i32_0 = arith.constant 0 : i32
    return %arg0, %c0_i32 : i32, i32
  }
}

</mosaic_0001>

<llo_original>
// kernel: contextual_embedding_pooling.1
$region0: #{contextual_embedding_pooling.1}
  #allocation0 [shape = 'u32[]', space=smem, size = 0x4, offset = 0x4, fixed_abs, tag = 'smem constant byte address 0x4 - core index']
  #allocation1 [shape = 'u32[144,128]{1,0:T(1,128)}', space=vmem, size = 0x12000, scoped, tag = 'internal scratch']
  %s0 = inlined_call_operand.vmem [shape: f32[2,8,32], index: 0, kind: input, shape index: {}]
  %s1 = inlined_call_operand.vmem [shape: f32[32,128], index: 1, kind: input, shape index: {}]
  %s2 = inlined_call_operand.vmem [shape: f32[1,128], index: 2, kind: input, shape index: {}]
  %s3 = inlined_call_operand.vmem [shape: f32[8,128], index: 3, kind: output, shape index: {}]
  %s4 = sld [smem:[#allocation0]]
  $region22: #{contextual_embedding_pooling.1} parent=0
    _
  %s6 = ssub.s32 1, %s4
  %s7 = scalar_select 0, %s6, %s4
  // Predicated region
  $region2: #{contextual_embedding_pooling.1} parent=0 // pred_check
    _
  $region3: #{contextual_embedding_pooling.1} parent=0 // pred_check_branch
    %9 = sbr.rel (0) target = $region5
  $region4: #{contextual_embedding_pooling.1} parent=0 // pred_region
    _
  $region5: #{contextual_embedding_pooling.1} parent=0 // pred_fallthru
    _
  // Predicated region
  $region6: #{contextual_embedding_pooling.1} parent=0 // pred_check
    _
  $region7: #{contextual_embedding_pooling.1} parent=0 // pred_check_branch
    %11 = sbr.rel (0) target = $region9
  $region8: #{contextual_embedding_pooling.1} parent=0 // pred_region
    _
  $region9: #{contextual_embedding_pooling.1} parent=0 // pred_fallthru
    _
  // Predicated region
  $region10: #{contextual_embedding_pooling.1} parent=0 // pred_check
    _
  $region11: #{contextual_embedding_pooling.1} parent=0 // pred_check_branch
    %13 = sbr.rel (0) target = $region13
  $region12: #{contextual_embedding_pooling.1} parent=0 // pred_region
    _
  $region13: #{contextual_embedding_pooling.1} parent=0 // pred_fallthru
    _
  %v14 = vld [vmem:[%s0] sm:$0xff]
  %v15 = vld [vmem:[%s0 + $0x8] sm:$0xff]
  %v16 = vlaneseq
  %v17 = vshrl.u32 %v16, 7
  %vm18 = vcmask 261120
  %v19 = vsel %vm18, %v14, -inf
  %v20 = vrot.slane %v19, 4
  %v21 = vmax.f32 %v19, %v20
  %v22 = vrot.slane %v21, 2
  %v23 = vmax.f32 %v21, %v22
  %v24 = vrot.slane %v23, 1
  %v25 = vmax.f32 %v23, %v24
  %v26 = vsel %vm18, %v15, -inf
  %v27 = vrot.slane %v26, 4
  %v28 = vmax.f32 %v26, %v27
  %v29 = vrot.slane %v28, 2
  %v30 = vmax.f32 %v28, %v29
  %v31 = vrot.slane %v30, 1
  %v32 = vmax.f32 %v30, %v31
  %vm33 = vcmp.eq.f32.partialorder %v14, %v25
  %vm34 = vcmp.eq.f32.partialorder %v15, %v32
  %vm35 = vcmp.ne.f32.partialorder %v14, %v14
  %vm36 = vcmp.ne.f32.partialorder %v15, %v15
  %vm37 = vcmp.ne.f32.partialorder %v25, %v25
  %vm38 = vcmp.ne.f32.partialorder %v32, %v32
  %v39 = vsel %vm37, 1, 0
  %v40 = vsel %vm38, 1, 0
  %vm41 = vcmp.eq.s32.totalorder %v39, 1
  %vm42 = vcmp.eq.s32.totalorder %v40, 1
  %vm43 = vmand %vm35, %vm41
  %vm44 = vmand %vm36, %vm42
  %vm45 = vmor %vm33, %vm43
  %vm46 = vmor %vm34, %vm44
  %v47 = vsel %vm45, %v17, 8
  %v48 = vsel %vm46, %v17, 8
  %v49 = vsel %vm18, %v47, 2147483647
  %v50 = vrot.slane %v49, 4
  %vm51 = vcmp.lt.s32.totalorder %v49, %v50
  %v52 = vsel %vm51, %v49, %v50
  %v53 = vrot.slane %v52, 2
  %vm54 = vcmp.lt.s32.totalorder %v52, %v53
  %v55 = vsel %vm54, %v52, %v53
  %v56 = vrot.slane %v55, 1
  %vm57 = vcmp.lt.s32.totalorder %v55, %v56
  %v58 = vsel %vm57, %v55, %v56
  %v59 = vsel %vm18, %v48, 2147483647
  %v60 = vrot.slane %v59, 4
  %vm61 = vcmp.lt.s32.totalorder %v59, %v60
  %v62 = vsel %vm61, %v59, %v60
  %v63 = vrot.slane %v62, 2
  %vm64 = vcmp.lt.s32.totalorder %v62, %v63
  %v65 = vsel %vm64, %v62, %v63
  %v66 = vrot.slane %v65, 1
  %vm67 = vcmp.lt.s32.totalorder %v65, %v66
  %v68 = vsel %vm67, %v65, %v66
  %vm69 = vcmp.eq.s32.totalorder %v17, %v58
  %vm70 = vcmp.eq.s32.totalorder %v17, %v68
  %v71 = vsel %vm69, -inf, %v14
  %v72 = vsel %vm70, -inf, %v15
  %v73 = vsel %vm18, %v71, -inf
  %v74 = vrot.slane %v73, 4
  %v75 = vmax.f32 %v73, %v74
  %v76 = vrot.slane %v75, 2
  %v77 = vmax.f32 %v75, %v76
  %v78 = vrot.slane %v77, 1
  %v79 = vmax.f32 %v77, %v78
  %v80 = vsel %vm18, %v72, -inf
  %v81 = vrot.slane %v80, 4
  %v82 = vmax.f32 %v80, %v81
  %v83 = vrot.slane %v82, 2
  %v84 = vmax.f32 %v82, %v83
  %v85 = vrot.slane %v84, 1
  %v86 = vmax.f32 %v84, %v85
  %vm87 = vcmp.eq.f32.partialorder %v71, %v79
  %vm88 = vcmp.eq.f32.partialorder %v72, %v86
  %vm89 = vcmp.ne.f32.partialorder %v71, %v71
  %vm90 = vcmp.ne.f32.partialorder %v72, %v72
  %vm91 = vcmp.ne.f32.partialorder %v79, %v79
  %vm92 = vcmp.ne.f32.partialorder %v86, %v86
  %v93 = vsel %vm91, 1, 0
  %v94 = vsel %vm92, 1, 0
  %vm95 = vcmp.eq.s32.totalorder %v93, 1
  %vm96 = vcmp.eq.s32.totalorder %v94, 1
  %vm97 = vmand %vm89, %vm95
  %vm98 = vmand %vm90, %vm96
  %vm99 = vmor %vm87, %vm97
  %vm100 = vmor %vm88, %vm98
  %v101 = vsel %vm99, %v17, 8
  %v102 = vsel %vm100, %v17, 8
  %v103 = vsel %vm18, %v101, 2147483647
  %v104 = vrot.slane %v103, 4
  %vm105 = vcmp.lt.s32.totalorder %v103, %v104
  %v106 = vsel %vm105, %v103, %v104
  %v107 = vrot.slane %v106, 2
  %vm108 = vcmp.lt.s32.totalorder %v106, %v107
  %v109 = vsel %vm108, %v106, %v107
  %v110 = vrot.slane %v109, 1
  %vm111 = vcmp.lt.s32.totalorder %v109, %v110
  %v112 = vsel %vm111, %v109, %v110
  %v113 = vsel %vm18, %v102, 2147483647
  %v114 = vrot.slane %v113, 4
  %vm115 = vcmp.lt.s32.totalorder %v113, %v114
  %v116 = vsel %vm115, %v113, %v114
  %v117 = vrot.slane %v116, 2
  %vm118 = vcmp.lt.s32.totalorder %v116, %v117
  %v119 = vsel %vm118, %v116, %v117
  %v120 = vrot.slane %v119, 1
  %vm121 = vcmp.lt.s32.totalorder %v119, %v120
  %v122 = vsel %vm121, %v119, %v120
  %vm123 = vcmp.eq.s32.totalorder %v17, %v112
  %vm124 = vcmp.eq.s32.totalorder %v17, %v122
  %v125 = vsel %vm123, -inf, %v71
  %v126 = vsel %vm124, -inf, %v72
  %v127 = vsel %vm18, %v125, -inf
  %v128 = vrot.slane %v127, 4
  %v129 = vmax.f32 %v127, %v128
  %v130 = vrot.slane %v129, 2
  %v131 = vmax.f32 %v129, %v130
  %v132 = vrot.slane %v131, 1
  %v133 = vmax.f32 %v131, %v132
  %v134 = vsel %vm18, %v126, -inf
  %v135 = vrot.slane %v134, 4
  %v136 = vmax.f32 %v134, %v135
  %v137 = vrot.slane %v136, 2
  %v138 = vmax.f32 %v136, %v137
  %v139 = vrot.slane %v138, 1
  %v140 = vmax.f32 %v138, %v139
  %vm141 = vcmp.eq.f32.partialorder %v125, %v133
  %vm142 = vcmp.eq.f32.partialorder %v126, %v140
  %vm143 = vcmp.ne.f32.partialorder %v125, %v125
  %vm144 = vcmp.ne.f32.partialorder %v126, %v126
  %vm145 = vcmp.ne.f32.partialorder %v133, %v133
  %vm146 = vcmp.ne.f32.partialorder %v140, %v140
  %v147 = vsel %vm145, 1, 0
  %v148 = vsel %vm146, 1, 0
  %vm149 = vcmp.eq.s32.totalorder %v147, 1
  %vm150 = vcmp.eq.s32.totalorder %v148, 1
  %vm151 = vmand %vm143, %vm149
  %vm152 = vmand %vm144, %vm150
  %vm153 = vmor %vm141, %vm151
  %vm154 = vmor %vm142, %vm152
  %v155 = vsel %vm153, %v17, 8
  %v156 = vsel %vm154, %v17, 8
  %v157 = vsel %vm18, %v155, 2147483647
  %v158 = vrot.slane %v157, 4
  %vm159 = vcmp.lt.s32.totalorder %v157, %v158
  %v160 = vsel %vm159, %v157, %v158
  %v161 = vrot.slane %v160, 2
  %vm162 = vcmp.lt.s32.totalorder %v160, %v161
  %v163 = vsel %vm162, %v160, %v161
  %v164 = vrot.slane %v163, 1
  %vm165 = vcmp.lt.s32.totalorder %v163, %v164
  %v166 = vsel %vm165, %v163, %v164
  %v167 = vsel %vm18, %v156, 2147483647
  %v168 = vrot.slane %v167, 4
  %vm169 = vcmp.lt.s32.totalorder %v167, %v168
  %v170 = vsel %vm169, %v167, %v168
  %v171 = vrot.slane %v170, 2
  %vm172 = vcmp.lt.s32.totalorder %v170, %v171
  %v173 = vsel %vm172, %v170, %v171
  %v174 = vrot.slane %v173, 1
  %vm175 = vcmp.lt.s32.totalorder %v173, %v174
  %v176 = vsel %vm175, %v173, %v174
  %vm177 = vcmp.eq.s32.totalorder %v17, %v166
  %vm178 = vcmp.eq.s32.totalorder %v17, %v176
  %v179 = vsel %vm177, -inf, %v125
  %v180 = vsel %vm178, -inf, %v126
  %v181 = vsel %vm18, %v179, -inf
  %v182 = vrot.slane %v181, 4
  %v183 = vmax.f32 %v181, %v182
  %v184 = vrot.slane %v183, 2
  %v185 = vmax.f32 %v183, %v184
  %v186 = vrot.slane %v185, 1
  %v187 = vmax.f32 %v185, %v186
  %v188 = vsel %vm18, %v180, -inf
  %v189 = vrot.slane %v188, 4
  %v190 = vmax.f32 %v188, %v189
  %v191 = vrot.slane %v190, 2
  %v192 = vmax.f32 %v190, %v191
  %v193 = vrot.slane %v192, 1
  %v194 = vmax.f32 %v192, %v193
  %vm197 = vcmask 1041409
  %v198 = vsel %vm197, %v32, %v25
  %vm202 = vcmask 1043459
  %v203 = vsel %vm202, %v86, %v79
  %vm207 = vcmask 1045509
  %v208 = vsel %vm207, %v140, %v133
  %vm212 = vcmask 1047559
  %v213 = vsel %vm212, %v194, %v187
  %vm215 = vcmask 1041408
  %v216 = vsel %vm215, %v198, %v203
  %vm217 = vcmask 1043456
  %v218 = vsel %vm217, %v216, %v208
  %vm219 = vcmask 1045504
  %v220 = vsel %vm219, %v218, %v213
  %v221 = vld [vmem:[%s1] sm:$0xff]
  %v222 = vld [vmem:[%s1 + $0x8] sm:$0xff]
  %v223 = vld [vmem:[%s1 + $0x10] sm:$0xff]
  %v224 = vld [vmem:[%s1 + $0x18] sm:$0xff]
  %v225 = vld [vmem:[%s2] sm:$0x1]
  %v227 = vlaneseq
  %v228 = vshrl.u32 %v227, 7
  %v229 = vsub.s32 0, %v228
  %v230 = vrot.slane %v225, %v229
  %v233 = vsel %vm18, %v220, 0
  %235 = vmatprep.subr.mxu0 0.0
  %236 = vmatpush1.msra.mxu0 %v221
  %237 = vmatprep.subr.mxu0 0.0
  %238 = vmatpush1.msra.mxu0 %v222
  %239 = vmatprep.subr.mxu0 0.0
  %240 = vmatpush1.msra.mxu0 %v223
  %241 = vmatprep.subr.mxu0 0.0
  %242 = vmatpush1.msra.mxu0 %v224
  %243 = vmatprep.subr.mxu0 0.0
  %244 = vmatpush1.msra.mxu0 0.0
  %245 = vmatprep.subr.mxu0 0.0
  %246 = vmatpush1.msra.mxu0 0.0
  %247 = vmatprep.subr.mxu0 0.0
  %248 = vmatpush1.msra.mxu0 0.0
  %249 = vmatprep.subr.mxu0 0.0
  %250 = vmatpush1.msra.mxu0 0.0
  %251 = vmatprep.subr.mxu0 0.0
  %252 = vmatpush1.msra.mxu0 0.0
  %253 = vmatprep.subr.mxu0 0.0
  %254 = vmatpush1.msra.mxu0 0.0
  %255 = vmatprep.subr.mxu0 0.0
  %256 = vmatpush1.msra.mxu0 0.0
  %257 = vmatprep.subr.mxu0 0.0
  %258 = vmatpush1.msra.mxu0 0.0
  %259 = vmatprep.subr.mxu0 0.0
  %260 = vmatpush1.msra.mxu0 0.0
  %261 = vmatprep.subr.mxu0 0.0
  %262 = vmatpush1.msra.mxu0 0.0
  %263 = vmatprep.subr.mxu0 0.0
  %264 = vmatpush1.msra.mxu0 0.0
  %265 = vmatprep.subr.mxu0 0.0
  %266 = vmatpush1.msra.mxu0 0.0
  %267 = vmatprep.subr.mxu0 0.0
  %268 = vmatpush1.msra.mxu0 0.0
  %269 = vmatprep.subr.mxu0 0.0
  %270 = vmatpush1.msra.mxu0 0.0
  %271 = vmatprep.subr.mxu0 0.0
  %272 = vmatpush1.msra.mxu0 0.0
  %273 = vmatprep.subr.mxu0 0.0
  %274 = vmatpush1.msra.mxu0 0.0
  %275 = vmatprep.subr.mxu0 0.0
  %276 = vmatpush1.msra.mxu0 0.0
  %277 = vmatprep.subr.mxu0 0.0
  %278 = vmatpush1.msra.mxu0 0.0
  %279 = vmatprep.subr.mxu0 0.0
  %280 = vmatpush1.msra.mxu0 0.0
  %281 = vmatprep.subr.mxu0 0.0
  %282 = vmatpush1.msra.mxu0 0.0
  %283 = vmatprep.subr.mxu0 0.0
  %284 = vmatpush1.msra.mxu0 0.0
  %285 = vmatprep.subr.mxu0 0.0
  %286 = vmatpush1.msra.mxu0 0.0
  %287 = vmatprep.subr.mxu0 0.0
  %288 = vmatpush1.msra.mxu0 0.0
  %289 = vmatprep.subr.mxu0 0.0
  %290 = vmatpush1.msra.mxu0 0.0
  %291 = vmatprep.subr.mxu0 0.0
  %292 = vmatpush1.msra.mxu0 0.0
  %293 = vmatprep.subr.mxu0 0.0
  %294 = vmatpush1.msra.mxu0 0.0
  %295 = vmatprep.subr.mxu0 0.0
  %296 = vmatpush1.msra.mxu0 0.0
  %297 = vmatprep.subr.mxu0 0.0
  %298 = vmatpush1.msra.mxu0 0.0
  %299 = vmatprep.mubr.f32.mxu0 0.0
  %300 = vmatmul.mubr.f32.gmra.mrb[0].mxu0 %v233
  %v301 = vpop.f32.mrb[0].mxu0
  %v302 = vadd.f32 %v230, %v301
  %v303 = vpop.f32.mrb[0].mxu0
  %304 = vdwg.mxu0
  %305 = vst [vmem:[%s3] sm:$0xff] %v302
  // Predicated region
  $region14: #{contextual_embedding_pooling.1} parent=0 // pred_check
    _
  $region15: #{contextual_embedding_pooling.1} parent=0 // pred_check_branch
    %307 = sbr.rel (0) target = $region17
  $region16: #{contextual_embedding_pooling.1} parent=0 // pred_region
    _
  $region17: #{contextual_embedding_pooling.1} parent=0 // pred_fallthru
    _
  // Predicated region
  $region18: #{contextual_embedding_pooling.1} parent=0 // pred_check
    _
  $region19: #{contextual_embedding_pooling.1} parent=0 // pred_check_branch
    %309 = sbr.rel (0) target = $region21
  $region20: #{contextual_embedding_pooling.1} parent=0 // pred_region
    _
  $region21: #{contextual_embedding_pooling.1} parent=0 // pred_fallthru
    _

</llo_original>
